<compile_context>
chip_gen: v7x
topology: tpu7x:2x2x1
jax: 0.10.0
libtpu: 0.0.40
codegen_flags: <defaults>
</compile_context>

<pallas_src>
import functools

import jax
import jax.numpy as jnp
from jax import lax
from jax.experimental import pallas as pl
from jax.experimental.pallas import tpu as pltpu


def _ipow(x, degree: int):
    """x ** degree for a positive integer degree via exponentiation by squaring."""
    d = degree
    base = x
    result = None
    while d > 0:
        if d & 1:
            result = base if result is None else result * base
        d >>= 1
        if d > 0:
            base = base * base
    return result


def _poly_value(x, degree: int):
    if degree >= 1:
        return _ipow(x, degree)
    # Negative integer degree: positive power, then exact reciprocal.
    return 1.0 / _ipow(x, -degree)


def _poly_kernel(x_ref, o_ref, *, degree: int):
    o_ref[...] = _poly_value(x_ref[...], degree).astype(o_ref.dtype)


def _poly_check_kernel(x_ref, o_ref, flag_ref, *, degree: int, total_rows: int):
    y = _poly_value(x_ref[...], degree)
    o_ref[...] = y.astype(o_ref.dtype)

    # Fused non-finite flag.  A ragged final block computes garbage in its tail
    # (its store is masked by Pallas), so mask those rows out of the flag too.
    block_rows = x_ref.shape[0]
    row0 = pl.program_id(0) * block_rows
    row_ids = row0 + lax.broadcasted_iota(jnp.int32, y.shape, 0)
    nonfinite = jnp.logical_and(jnp.logical_not(jnp.isfinite(y)),
                                row_ids < total_rows)
    bad = jnp.max(nonfinite.astype(jnp.float32), axis=1, keepdims=True)  # (rows,1)
    bad = jnp.max(bad, axis=0, keepdims=True)                            # (1,1)
    flag_ref[...] = jnp.broadcast_to(bad, flag_ref.shape)


_TARGET_BLOCK_ELEMS = 512 * 1024        # 2 MiB per f32 block
_LANE_CANDIDATES = (1024, 512, 256, 128)


def poly_forward(x: jax.Array, degree: int, *, check_finite: bool = False):
    """Elementwise x ** degree via a Pallas TPU kernel.

    Returns `out`, or `(out, has_nonfinite)` when check_finite=True.
    # TODO(synk): the PyTorch module drops into breakpoint() on NaN/Inf; there
    # is no interactive-debugger equivalent, so a fused boolean flag is
    # returned to the host instead.
    """
    orig_shape = x.shape
    dtype = x.dtype
    n = x.size

    if degree == 0:
        out = jnp.ones(orig_shape, dtype)
        return (out, jnp.asarray(False)) if check_finite else out
    if degree == 1 and not check_finite:
        return x  # x ** 1 == x; avoid a pure-copy pass over HBM.

    # Lane-dense 2-D slab; reshape of a contiguous array is free.
    lane = next((c for c in _LANE_CANDIDATES if n % c == 0), None)
    flat = x.reshape(-1)
    if lane is None:
        lane = 128
        n_slab = pl.cdiv(n, lane) * lane
        flat = jnp.pad(flat, (0, n_slab - n))   # < 128 zeros (zeros stay finite)
    else:
        n_slab = n
    rows = n_slab // lane
    x2d = flat.reshape(rows, lane)

    # Block rows: either the preset size (a multiple of 8) or the full extent.
    block_rows = min(rows, _TARGET_BLOCK_ELEMS // lane)
    grid = (pl.cdiv(rows, block_rows),)
    data_spec = pl.BlockSpec((block_rows, lane), lambda i: (i, 0))
    cparams = pltpu.CompilerParams(
        dimension_semantics=("parallel",),
        vmem_limit_bytes=32 * 1024 * 1024,
    )

    if not check_finite:
        out2d = pl.pallas_call(
            functools.partial(_poly_kernel, degree=degree),
            out_shape=jax.ShapeDtypeStruct((rows, lane), dtype),
            grid_spec=pltpu.PrefetchScalarGridSpec(
                num_scalar_prefetch=0,
                grid=grid,
                in_specs=[data_spec],
                out_specs=data_spec,
            ),
            compiler_params=cparams,
        )(x2d)
        return out2d.reshape(-1)[:n].reshape(orig_shape)

    num_blocks = grid[0]
    out2d, flags = pl.pallas_call(
        functools.partial(_poly_check_kernel, degree=degree, total_rows=rows),
        out_shape=(
            jax.ShapeDtypeStruct((rows, lane), dtype),
            jax.ShapeDtypeStruct((num_blocks * 8, 128), jnp.float32),
        ),
        grid_spec=pltpu.PrefetchScalarGridSpec(
            num_scalar_prefetch=0,
            grid=grid,
            in_specs=[data_spec],
            out_specs=(
                data_spec,
                pl.BlockSpec((8, 128), lambda i: (i, 0)),
            ),
        ),
        compiler_params=cparams,
    )(x2d)
    out = out2d.reshape(-1)[:n].reshape(orig_shape)
    has_nonfinite = jnp.any(flags > 0.0)
    return out, has_nonfinite


if __name__ == "__main__":
    key = jax.random.PRNGKey(0)
    # Small NCHW input consistent with the module's usage in a CNN pipeline.
    x = jax.random.normal(key, (2, 4, 16, 16), dtype=jnp.float32)
    degree = 3  # Poly(degree=3)

    out = jax.block_until_ready(poly_forward(x, degree))
    ref = x ** degree
    assert out.shape == ref.shape and out.dtype == ref.dtype
    assert jnp.allclose(out, ref, atol=1e-6, rtol=1e-6), "mismatch vs reference"

    # Exercise the fused NaN/Inf debug path (the module's breakpoint branch).
    out2, bad = jax.block_until_ready(poly_forward(x, degree, check_finite=True))
    assert jnp.allclose(out2, ref, atol=1e-6, rtol=1e-6), "mismatch (check path)"
    assert not bool(bad), "finite input flagged as non-finite"

    print("KERNEL_OK")
</pallas_src>

<mosaic_0001>
module attributes {stable_mosaic.version = 11 : i64} {
  func.func @_poly_kernel(%arg0: i32, %arg1: memref<2x1024xf32, #tpu.memory_space<vmem>>, %arg2: memref<2x1024xf32, #tpu.memory_space<vmem>>) attributes {dimension_semantics = [#tpu.dimension_semantics<parallel>], iteration_bounds = array<i64: 1>, scalar_prefetch = 0 : i64, scratch_operands = 0 : i64, tpu.core_type = #tpu.core_type<tc>, window_params = [{transform_indices = @transform_0, window_bounds = array<i64: 2, 1024>}, {transform_indices = @transform_1, window_bounds = array<i64: 2, 1024>}]} {
    %c0 = arith.constant 0 : index
    %c0_0 = arith.constant 0 : index
    %0 = vector.load %arg1[%c0, %c0_0] : memref<2x1024xf32, #tpu.memory_space<vmem>>, vector<2x1024xf32>
    %1 = arith.mulf %0, %0 : vector<2x1024xf32>
    %2 = arith.mulf %0, %1 : vector<2x1024xf32>
    %c0_1 = arith.constant 0 : index
    %c0_2 = arith.constant 0 : index
    %3 = vector.load %arg2[%c0_1, %c0_2] : memref<2x1024xf32, #tpu.memory_space<vmem>>, vector<2x1024xf32>
    tpu.vector_store %arg2[%c0_1, %c0_2], %2 {strides = array<i32>} : memref<2x1024xf32, #tpu.memory_space<vmem>>, vector<2x1024xf32>,
    return
  }
  func.func @transform_0(%arg0: i32) -> (i32, i32) {
    %c0_i32 = arith.constant 0 : i32
    %c0_i32_0 = arith.constant 0 : i32
    return %arg0, %c0_i32 : i32, i32
  }
  func.func @transform_1(%arg0: i32) -> (i32, i32) {
    %c0_i32 = arith.constant 0 : i32
    %c0_i32_0 = arith.constant 0 : i32
    return %arg0, %c0_i32 : i32, i32
  }
}

</mosaic_0001>

<llo_original>
// kernel: tpu_custom_call.1
$region0: #{tpu_custom_call.1}
  #allocation0 [shape = 'u32[]', space=smem, size = 0x4, offset = 0x4, fixed_abs, tag = 'smem constant byte address 0x4 - core index']
  #allocation1 [shape = 'u32[144,128]{1,0:T(1,128)}', space=vmem, size = 0x12000, scoped, tag = 'internal scratch']
  %s0 = inlined_call_operand.hbm [shape: f32[2,1024], index: 0, kind: input, shape index: {}]
  %s1 = inlined_call_operand.hbm [shape: f32[2,1024], index: 1, kind: output, shape index: {}]
  %s2 = sld [smem:[#allocation0]]
  $region18: #{tpu_custom_call.1} parent=0
    _
  %s4 = ssub.s32 1, %s2
  %s5 = scalar_select 0, %s4, %s2
  $region1: #{tpu_custom_call.1} parent=0
    #allocation2 [shape = 'u8[8192]{0}', space=vmem, size = 0x2000, scoped, tag = 'input window, operand 0, single buffered']
    #allocation3 [shape = 's32[1]{0}', space=sflag, size = 0x4, scoped, tag = 'scoped memory for tpu_custom_call.1']
    #allocation4 [shape = 's32[1]{0}', space=sflag, size = 0x4, scoped, tag = 'scoped memory for tpu_custom_call.1']
    #allocation5 [shape = 'u8[8192]{0}', space=vmem, size = 0x2000, scoped, tag = 'output window, operand 0, single buffered']
    %6 = vsyncpa [#allocation3], 0
    %7 = vsyncpa [#allocation4], 0
    // Predicated region
    $region2: #{tpu_custom_call.1} parent=1 // pred_check
      _
    $region3: #{tpu_custom_call.1} parent=1 // pred_check_branch
      %9 = sbr.rel (0) target = $region5
    $region4: #{tpu_custom_call.1} parent=1 // pred_region
      %s11 = ssub.s32 256, 256
      %12 = vsyncadd [#allocation3], %s11
      %s14 = sshll.u32 [#allocation2], 4
      %s15 = int_to_ptr.vmem [resolvable:$true] %s14
      %17 = dma.hbm_to_vmem [thread:$0]  %s0, 256, %s15, [#allocation3]
    $region5: #{tpu_custom_call.1} parent=1 // pred_fallthru
      _
    // Predicated region
    $region6: #{tpu_custom_call.1} parent=1 // pred_check
      _
    $region7: #{tpu_custom_call.1} parent=1 // pred_check_branch
      %19 = sbr.rel (0) target = $region9
    $region8: #{tpu_custom_call.1} parent=1 // pred_region
      %20 = dma.done [#allocation3], 256
    $region9: #{tpu_custom_call.1} parent=1 // pred_fallthru
      _
    %v21 = vld [vmem:[#allocation2] sm:$0xff]
    %v22 = vld [vmem:[#allocation2 + $0x8] sm:$0xff]
    %v23 = vmul.f32 %v21, %v21
    %v24 = vmul.f32 %v22, %v22
    %v25 = vmul.f32 %v21, %v23
    %v26 = vmul.f32 %v22, %v24
    %27 = vst [vmem:[#allocation5] sm:$0xff] %v25
    %28 = vst [vmem:[#allocation5 + $0x8] sm:$0xff] %v26
    // Predicated region
    $region10: #{tpu_custom_call.1} parent=1 // pred_check
      _
    $region11: #{tpu_custom_call.1} parent=1 // pred_check_branch
      %30 = sbr.rel (0) target = $region13
    $region12: #{tpu_custom_call.1} parent=1 // pred_region
      %s32 = ssub.s32 256, 256
      %33 = vsyncadd [#allocation4], %s32
      %s35 = sshll.u32 [#allocation5], 4
      %s36 = int_to_ptr.vmem [resolvable:$true] %s35
      %38 = dma.vmem_to_hbm [thread:$0]  %s36, 256, %s1, [#allocation4]
    $region13: #{tpu_custom_call.1} parent=1 // pred_fallthru
      _
    // Predicated region
    $region14: #{tpu_custom_call.1} parent=1 // pred_check
      _
    $region15: #{tpu_custom_call.1} parent=1 // pred_check_branch
      %40 = sbr.rel (0) target = $region17
    $region16: #{tpu_custom_call.1} parent=1 // pred_region
      %41 = dma.done [#allocation4], 256
    $region17: #{tpu_custom_call.1} parent=1 // pred_fallthru
      _
    %42 = vsyncpa [#allocation3], 1
    %43 = vsyncpa [#allocation4], 1

</llo_original>
